<compile_context>
chip_gen: v7x
topology: tpu7x:2x2x1
jax: 0.10.0
libtpu: 0.0.40
codegen_flags: <defaults>
</compile_context>

<pallas_src>
import math

import jax
import jax.numpy as jnp
from jax.experimental import pallas as pl
from jax.experimental.pallas import tpu as pltpu

S_PARAM = 10.0
T_PARAM = 10.0

# Trace-time constants (folded into the kernel, no runtime scalar work).
_INV_S = 1.0 / S_PARAM
_THR = T_PARAM / S_PARAM
_LOG2_OVER_S = math.log(2.0) / S_PARAM

_LANE_WIDTH = 512                   # lane-dense slab width (multiple of 128)
_TARGET_BLOCK_BYTES = 2 * 1024 * 1024  # ~2 MiB per block (native dtype)


def _cdiv(a: int, b: int) -> int:
    return -(-a // b)


def _round_up(a: int, b: int) -> int:
    return _cdiv(a, b) * b


def _srelu_kernel(x_ref, o_ref):
    # Load in native dtype, compute in f32, store back in native dtype.
    x = x_ref[...].astype(jnp.float32)
    big = x > _THR
    x_big = jnp.where(big, x, 0.0)                      # F.threshold(x, t/s, 0)
    x_small = x - x_big                                 # <= t/s, exp never overflows
    offset = jnp.where(big, _LOG2_OVER_S, 0.0)
    y = x_big + _INV_S * jnp.log1p(jnp.exp(S_PARAM * x_small)) - offset
    o_ref[...] = y.astype(o_ref.dtype)


def _vmem_limit_bytes() -> int:
    """Per-generation scoped-VMEM budget (v7x only has 64 MiB physical)."""
    try:
        cap = pltpu.get_tpu_info().vmem_capacity_bytes
    except Exception:
        cap = 64 * 1024 * 1024
    return min(cap // 2, 64 * 1024 * 1024)


def srelu(x: jax.Array) -> jax.Array:
    """sReLU forward for any shape / dtype / size."""
    orig_shape = x.shape
    orig_dtype = x.dtype
    n = x.size

    itemsize = jnp.dtype(orig_dtype).itemsize
    # Minimum sublane multiple for the native dtype (f32: 8, bf16: 16, 8-bit: 32).
    sublane_mult = max(8, 32 // max(1, itemsize))

    # Lane-dense slab: rows of _LANE_WIDTH elements.
    rows = _cdiv(n, _LANE_WIDTH)
    padded_n = rows * _LANE_WIDTH

    x_flat = x.reshape(-1)
    if padded_n != n:
        # Only the <=511-element tail of the last row is padded.
        x_flat = jnp.pad(x_flat, (0, padded_n - n))
    x2d = x_flat.reshape(rows, _LANE_WIDTH)

    out_shape = jax.ShapeDtypeStruct((rows, _LANE_WIDTH), orig_dtype)
    cost = pl.CostEstimate(
        flops=8 * n,
        transcendentals=2 * n,
        bytes_accessed=2 * n * itemsize,
    )

    # Byte-budgeted block: same ~2 MiB footprint regardless of dtype.
    max_block_rows = max(
        sublane_mult,
        (_TARGET_BLOCK_BYTES // (_LANE_WIDTH * itemsize)) // sublane_mult * sublane_mult,
    )

    if rows <= max_block_rows:
        # Single block covering the whole slab: no grid, no pipeline overhead.
        out = pl.pallas_call(
            _srelu_kernel,
            out_shape=out_shape,
            compiler_params=pltpu.CompilerParams(
                vmem_limit_bytes=_vmem_limit_bytes(),
            ),
            cost_estimate=cost,
        )(x2d)
    else:
        # Adaptive block_rows: split rows into near-equal blocks, rounded to the
        # sublane multiple.  The last block may be ragged; Pallas masks it.
        num_blocks = _cdiv(rows, max_block_rows)
        block_rows = _round_up(_cdiv(rows, num_blocks), sublane_mult)
        grid = _cdiv(rows, block_rows)

        out = pl.pallas_call(
            _srelu_kernel,
            out_shape=out_shape,
            grid_spec=pltpu.PrefetchScalarGridSpec(
                num_scalar_prefetch=0,
                grid=(grid,),
                in_specs=[pl.BlockSpec((block_rows, _LANE_WIDTH), lambda i: (i, 0))],
                out_specs=pl.BlockSpec((block_rows, _LANE_WIDTH), lambda i: (i, 0)),
            ),
            compiler_params=pltpu.CompilerParams(
                dimension_semantics=("parallel",),   # shards across v7x's 2 TCs
                vmem_limit_bytes=_vmem_limit_bytes(),
            ),
            cost_estimate=cost,
        )(x2d)

    if padded_n != n:
        return out.reshape(-1)[:n].reshape(orig_shape)
    return out.reshape(orig_shape)


def _srelu_ref(x):
    """Pure-JAX reference mirroring the torch module line-by-line."""
    s, t = S_PARAM, T_PARAM
    thr = t / s
    xf = x.astype(jnp.float32)
    x_big = jnp.where(xf > thr, xf, 0.0)
    x_small = xf - x_big
    offset = jnp.where(xf > thr, (1.0 / s) * math.log(2.0), 0.0)
    return (x_big + (1.0 / s) * jnp.log(1.0 + jnp.exp(s * x_small)) - offset).astype(x.dtype)


if __name__ == "__main__":
    key = jax.random.PRNGKey(0)

    # 1) NCHW input, small shape (lane-aligned -> no pad, single block).
    x = jax.random.normal(key, (2, 4, 16, 16), dtype=jnp.float32) * 2.0
    y = srelu(x)
    jax.block_until_ready(y)
    y_ref = _srelu_ref(x)
    assert y.shape == x.shape and y.dtype == x.dtype
    assert jnp.allclose(y, y_ref, atol=1e-5, rtol=1e-5), "mismatch (small path)"

    # 2) Unaligned total size (exercises the <=511-element tail-pad path).
    x_unaligned = jax.random.normal(jax.random.PRNGKey(1), (3, 7, 131, 129), dtype=jnp.float32)
    y_unaligned = srelu(x_unaligned)
    jax.block_until_ready(y_unaligned)
    assert jnp.allclose(y_unaligned, _srelu_ref(x_unaligned), atol=1e-5, rtol=1e-5), \
        "mismatch (unaligned path)"

    # 3) Multi-block tiled path with a ragged last block (rows=1100 > 1024,
    #    adaptive block_rows, masked final block, no wrapper-side pad/slice).
    x_tiled = jax.random.normal(jax.random.PRNGKey(2), (1100, 512), dtype=jnp.float32) * 1.5
    y_tiled = srelu(x_tiled)
    jax.block_until_ready(y_tiled)
    assert jnp.allclose(y_tiled, _srelu_ref(x_tiled), atol=1e-5, rtol=1e-5), \
        "mismatch (tiled path)"

    # 4) bf16 input (byte-budgeted block sizing, f32 compute inside kernel).
    x_bf16 = (jax.random.normal(jax.random.PRNGKey(3), (4, 64, 128)) * 2.0).astype(jnp.bfloat16)
    y_bf16 = srelu(x_bf16)
    jax.block_until_ready(y_bf16)
    assert y_bf16.dtype == jnp.bfloat16
    assert jnp.allclose(y_bf16.astype(jnp.float32),
                        _srelu_ref(x_bf16).astype(jnp.float32),
                        atol=2e-2, rtol=2e-2), "mismatch (bf16 path)"

    print("KERNEL_OK")
</pallas_src>

<mosaic_0001>
module attributes {stable_mosaic.version = 11 : i64} {
  func.func @_srelu_kernel(%arg0: memref<4x512xf32, #tpu.memory_space<vmem>>, %arg1: memref<4x512xf32, #tpu.memory_space<vmem>>) attributes {dimension_semantics = [], scalar_prefetch = 0 : i64, scratch_operands = 0 : i64, tpu.core_type = #tpu.core_type<tc>} {
    %c0 = arith.constant 0 : index
    %c0_0 = arith.constant 0 : index
    %0 = vector.load %arg0[%c0, %c0_0] : memref<4x512xf32, #tpu.memory_space<vmem>>, vector<4x512xf32>
    %cst = arith.constant 1.000000e+00 : f32
    %1 = vector.broadcast %cst : f32 to vector<4x512xf32>
    %2 = arith.cmpf ogt, %0, %1 : vector<4x512xf32>
    %cst_1 = arith.constant 0.000000e+00 : f32
    %3 = vector.broadcast %cst_1 : f32 to vector<4x512xf32>
    %4 = arith.select %2, %0, %3 : vector<4x512xi1>, vector<4x512xf32>
    %5 = arith.subf %0, %4 : vector<4x512xf32>
    %cst_2 = arith.constant 0.0693147182 : f32
    %cst_3 = arith.constant 0.000000e+00 : f32
    %6 = vector.broadcast %cst_2 : f32 to vector<4x512xf32>
    %7 = vector.broadcast %cst_3 : f32 to vector<4x512xf32>
    %8 = arith.select %2, %6, %7 : vector<4x512xi1>, vector<4x512xf32>
    %cst_4 = arith.constant 1.000000e+01 : f32
    %9 = vector.broadcast %cst_4 : f32 to vector<4x512xf32>
    %10 = arith.mulf %9, %5 : vector<4x512xf32>
    %11 = math.exp %10 : vector<4x512xf32>
    %12 = math.log1p %11 : vector<4x512xf32>
    %cst_5 = arith.constant 1.000000e-01 : f32
    %13 = vector.broadcast %cst_5 : f32 to vector<4x512xf32>
    %14 = arith.mulf %13, %12 : vector<4x512xf32>
    %15 = arith.addf %4, %14 : vector<4x512xf32>
    %16 = arith.subf %15, %8 : vector<4x512xf32>
    %c0_6 = arith.constant 0 : index
    %c0_7 = arith.constant 0 : index
    %17 = vector.load %arg1[%c0_6, %c0_7] : memref<4x512xf32, #tpu.memory_space<vmem>>, vector<4x512xf32>
    tpu.vector_store %arg1[%c0_6, %c0_7], %16 {strides = array<i32>} : memref<4x512xf32, #tpu.memory_space<vmem>>, vector<4x512xf32>,
    return
  }
}

</mosaic_0001>

<llo_original>
// kernel: tpu_custom_call.1
$region0: #{tpu_custom_call.1}
  #allocation0 [shape = 'u32[]', space=smem, size = 0x4, offset = 0x4, fixed_abs, tag = 'smem constant byte address 0x4 - core index']
  #allocation1 [shape = 'u32[144,128]{1,0:T(1,128)}', space=vmem, size = 0x12000, scoped, tag = 'internal scratch']
  %s0 = inlined_call_operand.hbm [shape: f32[4,512], index: 0, kind: input, shape index: {}]
  %s1 = inlined_call_operand.hbm [shape: f32[4,512], index: 1, kind: output, shape index: {}]
  %s2 = sld [smem:[#allocation0]]
  $region18: #{tpu_custom_call.1} parent=0
    _
  %s4 = ssub.s32 1, %s2
  %s5 = scalar_select 0, %s4, %s2
  $region1: #{tpu_custom_call.1} parent=0
    #allocation2 [shape = 'u8[8192]{0}', space=vmem, size = 0x2000, scoped, tag = 'input window, operand 0, single buffered']
    #allocation3 [shape = 's32[1]{0}', space=sflag, size = 0x4, scoped, tag = 'scoped memory for tpu_custom_call.1']
    #allocation4 [shape = 's32[1]{0}', space=sflag, size = 0x4, scoped, tag = 'scoped memory for tpu_custom_call.1']
    #allocation5 [shape = 'u8[8192]{0}', space=vmem, size = 0x2000, scoped, tag = 'output window, operand 0, single buffered']
    %6 = vsyncpa [#allocation3], 0
    %7 = vsyncpa [#allocation4], 0
    // Predicated region
    $region2: #{tpu_custom_call.1} parent=1 // pred_check
      _
    $region3: #{tpu_custom_call.1} parent=1 // pred_check_branch
      %9 = sbr.rel (0) target = $region5
    $region4: #{tpu_custom_call.1} parent=1 // pred_region
      %s11 = ssub.s32 256, 256
      %12 = vsyncadd [#allocation3], %s11
      %s14 = sshll.u32 [#allocation2], 4
      %s15 = int_to_ptr.vmem [resolvable:$true] %s14
      %17 = dma.hbm_to_vmem [thread:$0]  %s0, 256, %s15, [#allocation3]
    $region5: #{tpu_custom_call.1} parent=1 // pred_fallthru
      _
    // Predicated region
    $region6: #{tpu_custom_call.1} parent=1 // pred_check
      _
    $region7: #{tpu_custom_call.1} parent=1 // pred_check_branch
      %19 = sbr.rel (0) target = $region9
    $region8: #{tpu_custom_call.1} parent=1 // pred_region
      %20 = dma.done [#allocation3], 256
    $region9: #{tpu_custom_call.1} parent=1 // pred_fallthru
      _
    %v21 = vld [vmem:[#allocation2] sm:$0xff]
    %v22 = vld [vmem:[#allocation2 + $0x8] sm:$0xff]
    %vm23 = vcmp.gt.f32.partialorder %v21, 1.0
    %vm24 = vcmp.gt.f32.partialorder %v22, 1.0
    %v25 = vsel %vm23, %v21, 0.0
    %v26 = vsel %vm24, %v22, 0.0
    %v27 = vsub.f32 %v21, %v25
    %v28 = vsub.f32 %v22, %v26
    %v29 = vsel %vm23, 0.06931472, 0.0
    %v30 = vsel %vm24, 0.06931472, 0.0
    %v31 = vmul.f32 %v27, 10.0
    %v32 = vmul.f32 %v28, 10.0
    %v33 = vmul.f32 %v31, 1.442695
    %v34 = vpow.pop %v33
    %v35 = vmul.f32 %v32, 1.442695
    %v36 = vpow.pop %v35
    %v37 = vadd.f32 %v34, 1.0
    %v38 = vlog2.pop %v37
    %v39 = vmul.f32 %v38, 0.6931472
    %v40 = vmul.f32 -0.5, %v34
    %v41 = vadd.f32 %v40, 1.0
    %v42 = vmul.f32 %v41, %v34
    %v43 = vand.u32 2147483647, %v34
    %vm44 = vcmp.lt.f32.partialorder %v43, 0.0004427343
    %v45 = vsel %vm44, %v42, %v39
    %v46 = vadd.f32 %v36, 1.0
    %v47 = vlog2.pop %v46
    %v48 = vmul.f32 %v47, 0.6931472
    %v49 = vmul.f32 -0.5, %v36
    %v50 = vadd.f32 %v49, 1.0
    %v51 = vmul.f32 %v50, %v36
    %v52 = vand.u32 2147483647, %v36
    %vm53 = vcmp.lt.f32.partialorder %v52, 0.0004427343
    %v54 = vsel %vm53, %v51, %v48
    %v55 = vmul.f32 %v45, 0.1
    %v56 = vmul.f32 %v54, 0.1
    %v57 = vadd.f32 %v25, %v55
    %v58 = vadd.f32 %v26, %v56
    %v59 = vsub.f32 %v57, %v29
    %v60 = vsub.f32 %v58, %v30
    %61 = vst [vmem:[#allocation5] sm:$0xff] %v59
    %62 = vst [vmem:[#allocation5 + $0x8] sm:$0xff] %v60
    // Predicated region
    $region10: #{tpu_custom_call.1} parent=1 // pred_check
      _
    $region11: #{tpu_custom_call.1} parent=1 // pred_check_branch
      %64 = sbr.rel (0) target = $region13
    $region12: #{tpu_custom_call.1} parent=1 // pred_region
      %s66 = ssub.s32 256, 256
      %67 = vsyncadd [#allocation4], %s66
      %s69 = sshll.u32 [#allocation5], 4
      %s70 = int_to_ptr.vmem [resolvable:$true] %s69
      %72 = dma.vmem_to_hbm [thread:$0]  %s70, 256, %s1, [#allocation4]
    $region13: #{tpu_custom_call.1} parent=1 // pred_fallthru
      _
    // Predicated region
    $region14: #{tpu_custom_call.1} parent=1 // pred_check
      _
    $region15: #{tpu_custom_call.1} parent=1 // pred_check_branch
      %74 = sbr.rel (0) target = $region17
    $region16: #{tpu_custom_call.1} parent=1 // pred_region
      %75 = dma.done [#allocation4], 256
    $region17: #{tpu_custom_call.1} parent=1 // pred_fallthru
      _
    %76 = vsyncpa [#allocation3], 1
    %77 = vsyncpa [#allocation4], 1

</llo_original>
